<compile_context>
chip_gen: v5e
topology: v5e:2x2
jax: 0.10.0
libtpu: 0.0.40
codegen_flags: <defaults>
</compile_context>

<pallas_src>
import numpy as np

import jax
import jax.numpy as jnp
from jax.experimental import pallas as pl
from jax.experimental.pallas import tpu as pltpu


def _pick_k_tile(K: int) -> int:
    """Lane-dense K tile: full K when small, else a multiple-of-128 divisor."""
    if K <= 512:
        return K
    for tk in (512, 384, 256, 128):
        if K % tk == 0:
            return tk
    return K  # fall back to a single full-K block


def _make_aurc_kernel(B: int, TK: int, nk: int):
    def kernel(x_ref, y_ref, inv_ref, o_ref, m_acc, z_acc, xy_acc):
        t = pl.program_id(0)

        # ---- init online-softmax / CE accumulators ------------------------
        @pl.when(t == 0)
        def _init():
            m_acc[...] = jnp.full((B, 1), -jnp.inf, dtype=jnp.float32)
            z_acc[...] = jnp.zeros((B, 1), dtype=jnp.float32)
            xy_acc[...] = jnp.zeros((B, 1), dtype=jnp.float32)

        # ---- per-K-tile online logsumexp + target-logit accumulation ------
        xt = x_ref[...].astype(jnp.float32)          # (B, TK) logits tile
        y = y_ref[...]                               # (B, 1) int32 targets

        m_t = jnp.max(xt, axis=-1, keepdims=True)    # (B, 1)
        m_old = m_acc[...]
        m_new = jnp.maximum(m_old, m_t)
        z_acc[...] = (z_acc[...] * jnp.exp(m_old - m_new)
                      + jnp.sum(jnp.exp(xt - m_new), axis=-1, keepdims=True))
        m_acc[...] = m_new

        cls = jax.lax.broadcasted_iota(jnp.int32, (B, TK), 1) + t * TK
        xy_acc[...] = xy_acc[...] + jnp.sum(
            jnp.where(cls == y, xt, 0.0), axis=-1, keepdims=True)

        # ---- rank / harmonic-weight stage on the last K step ---------------
        @pl.when(t == nk - 1)
        def _finalize():
            z = z_acc[...]                                       # (B, 1), conf = 1/z
            loss = (m_acc[...] + jnp.log(z)) - xy_acc[...]       # (B, 1) CE per sample

            # (1, B) row view: pure relayout -> bitwise identical to z, so the
            # strict '<' below excludes the self-pair exactly.
            z_row = jnp.transpose(z)                             # (1, B)

            # conf_j > conf_k  <=>  z_j < z_k  (no reciprocals needed)
            greater = (z_row < z).astype(jnp.float32)            # (B, B)
            ones_col = jnp.ones((B, 1), dtype=jnp.float32)
            rank = jnp.dot(greater, ones_col,
                           preferred_element_type=jnp.float32)   # (B, 1), exact count

            # w(rank) = sum_{i=rank+1}^{B-1} 1/i, via MXU dot with the
            # trace-time 1/i table (inv_ref[0] == 0, never selected anyway).
            i_row = jax.lax.broadcasted_iota(
                jnp.int32, (1, B), 1).astype(jnp.float32)        # (1, B): 0..B-1
            tail = (i_row > rank).astype(jnp.float32)            # (B, B)
            w = jnp.dot(tail, inv_ref[...],
                        preferred_element_type=jnp.float32)      # (B, 1)

            total = jnp.sum(loss * w, axis=(0, 1), keepdims=True)  # (1, 1)
            o_ref[...] = total * (1.0 / B)

    return kernel


def aurc_loss(x, y):
    """x: (B, K) float32/bfloat16 logits, y: (B,) int targets -> scalar f32."""
    B, K = x.shape
    if x.dtype not in (jnp.float32, jnp.bfloat16):
        x = x.astype(jnp.float32)          # keep bf16 logits as-is (half the DMA)
    y_col = y.astype(jnp.int32).reshape(B, 1)

    # Trace-time harmonic table: inv[i] = 1/i for i >= 1, inv[0] = 0.
    inv_np = np.zeros((B, 1), dtype=np.float32)
    if B > 1:
        inv_np[1:, 0] = 1.0 / np.arange(1, B, dtype=np.float32)
    inv_col = jnp.asarray(inv_np)

    TK = _pick_k_tile(K)
    nk = K // TK

    grid_spec = pltpu.PrefetchScalarGridSpec(
        num_scalar_prefetch=0,
        grid=(nk,),
        in_specs=[
            pl.BlockSpec((B, TK), lambda t: (0, t)),   # logits, K-tiled
            pl.BlockSpec((B, 1), lambda t: (0, 0)),    # targets
            pl.BlockSpec((B, 1), lambda t: (0, 0)),    # 1/i table (constant)
        ],
        out_specs=pl.BlockSpec((1, 1), lambda t: (0, 0)),
        scratch_shapes=[pltpu.VMEM((B, 1), jnp.float32)] * 3,   # m, z, x_y
    )

    out = pl.pallas_call(
        _make_aurc_kernel(B, TK, nk),
        out_shape=jax.ShapeDtypeStruct((1, 1), jnp.float32),
        grid_spec=grid_spec,
        compiler_params=pltpu.CompilerParams(
            dimension_semantics=("arbitrary",)),
    )(x, y_col, inv_col)
    return out[0, 0]


def aurc_loss_reference(x, y):
    """Pure-JAX reference mirroring the PyTorch loop (g='msp', CE loss)."""
    B, K = x.shape
    conf = jnp.max(jax.nn.softmax(x, axis=-1), axis=-1)
    order = jnp.argsort(-conf)
    xs = x[order]
    ys = y[order]
    lse = jax.scipy.special.logsumexp(xs, axis=-1)
    losses = lse - xs[jnp.arange(B), ys]
    final_sum = jnp.float32(0.0)
    partial = losses[0]
    for i in range(1, B):
        final_sum = final_sum + partial / i
        partial = partial + losses[i]
    return final_sum / B


if __name__ == "__main__":
    B, K = 8, 32  # batch of 8 samples, 32 classes
    key = jax.random.PRNGKey(0)
    kx, ky = jax.random.split(key)
    x = jax.random.normal(kx, (B, K), dtype=jnp.float32)
    y = jax.random.randint(ky, (B,), 0, K, dtype=jnp.int32)

    out = jax.block_until_ready(aurc_loss(x, y))
    ref = jax.block_until_ready(aurc_loss_reference(x, y))

    assert jnp.isfinite(out), "kernel produced non-finite output"
    assert abs(float(out) - float(ref)) < 1e-4, (float(out), float(ref))
    print("KERNEL_OK")
</pallas_src>

<mosaic_0001>
module attributes {stable_mosaic.version = 11 : i64} {
  func.func @kernel(%arg0: i32, %arg1: memref<8x32xf32, #tpu.memory_space<vmem>>, %arg2: memref<8x1xi32, #tpu.memory_space<vmem>>, %arg3: memref<8x1xf32, #tpu.memory_space<vmem>>, %arg4: memref<1x1xf32, #tpu.memory_space<vmem>>, %arg5: memref<8x1xf32, #tpu.memory_space<vmem>>, %arg6: memref<8x1xf32, #tpu.memory_space<vmem>>, %arg7: memref<8x1xf32, #tpu.memory_space<vmem>>) attributes {dimension_semantics = [#tpu.dimension_semantics<arbitrary>], iteration_bounds = array<i64: 1>, scalar_prefetch = 0 : i64, scratch_operands = 3 : i64, tpu.core_type = #tpu.core_type<tc>, window_params = [{transform_indices = @transform_0, window_bounds = array<i64: 8, 32>}, {pipeline_mode = #tpu.pipeline_mode<synchronous>, transform_indices = @transform_1, window_bounds = array<i64: 8, 1>}, {pipeline_mode = #tpu.pipeline_mode<synchronous>, transform_indices = @transform_2, window_bounds = array<i64: 8, 1>}, {pipeline_mode = #tpu.pipeline_mode<synchronous>, transform_indices = @transform_3, window_bounds = array<i64: 1, 1>}]} {
    %c0_i32 = arith.constant 0 : i32
    %0 = arith.cmpi eq, %arg0, %c0_i32 : i32
    %1 = arith.extui %0 : i1 to i32
    %c0_i32_0 = arith.constant 0 : i32
    %2 = arith.cmpi ne, %1, %c0_i32_0 : i32
    scf.if %2 {
      %cst_21 = arith.constant 0xFF800000 : f32
      %37 = vector.broadcast %cst_21 : f32 to vector<8x1xf32>
      %c0_22 = arith.constant 0 : index
      %c0_23 = arith.constant 0 : index
      %38 = vector.load %arg5[%c0_22, %c0_23] : memref<8x1xf32, #tpu.memory_space<vmem>>, vector<8x1xf32>
      tpu.vector_store %arg5[%c0_22, %c0_23], %37 {strides = array<i32>} : memref<8x1xf32, #tpu.memory_space<vmem>>, vector<8x1xf32>,
      %cst_24 = arith.constant 0.000000e+00 : f32
      %39 = vector.broadcast %cst_24 : f32 to vector<8x1xf32>
      %c0_25 = arith.constant 0 : index
      %c0_26 = arith.constant 0 : index
      %40 = vector.load %arg6[%c0_25, %c0_26] : memref<8x1xf32, #tpu.memory_space<vmem>>, vector<8x1xf32>
      tpu.vector_store %arg6[%c0_25, %c0_26], %39 {strides = array<i32>} : memref<8x1xf32, #tpu.memory_space<vmem>>, vector<8x1xf32>,
      %cst_27 = arith.constant 0.000000e+00 : f32
      %41 = vector.broadcast %cst_27 : f32 to vector<8x1xf32>
      %c0_28 = arith.constant 0 : index
      %c0_29 = arith.constant 0 : index
      %42 = vector.load %arg7[%c0_28, %c0_29] : memref<8x1xf32, #tpu.memory_space<vmem>>, vector<8x1xf32>
      tpu.vector_store %arg7[%c0_28, %c0_29], %41 {strides = array<i32>} : memref<8x1xf32, #tpu.memory_space<vmem>>, vector<8x1xf32>,
    } else {
    }
    %c0 = arith.constant 0 : index
    %c0_1 = arith.constant 0 : index
    %3 = vector.load %arg1[%c0, %c0_1] : memref<8x32xf32, #tpu.memory_space<vmem>>, vector<8x32xf32>
    %c0_2 = arith.constant 0 : index
    %c0_3 = arith.constant 0 : index
    %4 = vector.load %arg2[%c0_2, %c0_3] : memref<8x1xi32, #tpu.memory_space<vmem>>, vector<8x1xi32>
    %cst = arith.constant dense<0xFF800000> : vector<8xf32>
    %5 = vector.multi_reduction <maximumf>, %3, %cst [1] : vector<8x32xf32> to vector<8xf32>
    %6 = vector.shape_cast %5 : vector<8xf32> to vector<8x1xf32>
    %c0_4 = arith.constant 0 : index
    %c0_5 = arith.constant 0 : index
    %7 = vector.load %arg5[%c0_4, %c0_5] : memref<8x1xf32, #tpu.memory_space<vmem>>, vector<8x1xf32>
    %8 = arith.maximumf %7, %6 : vector<8x1xf32>
    %c0_6 = arith.constant 0 : index
    %c0_7 = arith.constant 0 : index
    %9 = vector.load %arg6[%c0_6, %c0_7] : memref<8x1xf32, #tpu.memory_space<vmem>>, vector<8x1xf32>
    %10 = arith.subf %7, %8 : vector<8x1xf32>
    %11 = math.exp %10 : vector<8x1xf32>
    %12 = arith.mulf %9, %11 : vector<8x1xf32>
    %13 = vector.broadcast %8 : vector<8x1xf32> to vector<8x32xf32>
    %14 = arith.subf %3, %13 : vector<8x32xf32>
    %15 = math.exp %14 : vector<8x32xf32>
    %cst_8 = arith.constant dense<0.000000e+00> : vector<8xf32>
    %16 = vector.multi_reduction <add>, %15, %cst_8 [1] : vector<8x32xf32> to vector<8xf32>
    %17 = vector.shape_cast %16 : vector<8xf32> to vector<8x1xf32>
    %18 = arith.addf %12, %17 : vector<8x1xf32>
    %c0_9 = arith.constant 0 : index
    %c0_10 = arith.constant 0 : index
    %19 = vector.load %arg6[%c0_9, %c0_10] : memref<8x1xf32, #tpu.memory_space<vmem>>, vector<8x1xf32>
    tpu.vector_store %arg6[%c0_9, %c0_10], %18 {strides = array<i32>} : memref<8x1xf32, #tpu.memory_space<vmem>>, vector<8x1xf32>,
    %c0_11 = arith.constant 0 : index
    %c0_12 = arith.constant 0 : index
    %20 = vector.load %arg5[%c0_11, %c0_12] : memref<8x1xf32, #tpu.memory_space<vmem>>, vector<8x1xf32>
    tpu.vector_store %arg5[%c0_11, %c0_12], %8 {strides = array<i32>} : memref<8x1xf32, #tpu.memory_space<vmem>>, vector<8x1xf32>,
    %21 = tpu.iota {dimensions = array<i32: 1>} : vector<8x32xi32>
    %c32_i32 = arith.constant 32 : i32
    %22 = arith.muli %arg0, %c32_i32 : i32
    %23 = vector.broadcast %22 : i32 to vector<8x32xi32>
    %24 = arith.addi %21, %23 : vector<8x32xi32>
    %c0_13 = arith.constant 0 : index
    %c0_14 = arith.constant 0 : index
    %25 = vector.load %arg7[%c0_13, %c0_14] : memref<8x1xf32, #tpu.memory_space<vmem>>, vector<8x1xf32>
    %26 = vector.broadcast %4 : vector<8x1xi32> to vector<8x32xi32>
    %27 = arith.cmpi eq, %24, %26 : vector<8x32xi32>
    %cst_15 = arith.constant 0.000000e+00 : f32
    %28 = vector.broadcast %cst_15 : f32 to vector<8x32xf32>
    %29 = arith.select %27, %3, %28 : vector<8x32xi1>, vector<8x32xf32>
    %cst_16 = arith.constant dense<0.000000e+00> : vector<8xf32>
    %30 = vector.multi_reduction <add>, %29, %cst_16 [1] : vector<8x32xf32> to vector<8xf32>
    %31 = vector.shape_cast %30 : vector<8xf32> to vector<8x1xf32>
    %32 = arith.addf %25, %31 : vector<8x1xf32>
    %c0_17 = arith.constant 0 : index
    %c0_18 = arith.constant 0 : index
    %33 = vector.load %arg7[%c0_17, %c0_18] : memref<8x1xf32, #tpu.memory_space<vmem>>, vector<8x1xf32>
    tpu.vector_store %arg7[%c0_17, %c0_18], %32 {strides = array<i32>} : memref<8x1xf32, #tpu.memory_space<vmem>>, vector<8x1xf32>,
    %c0_i32_19 = arith.constant 0 : i32
    %34 = arith.cmpi eq, %arg0, %c0_i32_19 : i32
    %35 = arith.extui %34 : i1 to i32
    %c0_i32_20 = arith.constant 0 : i32
    %36 = arith.cmpi ne, %35, %c0_i32_20 : i32
    scf.if %36 {
      %c0_21 = arith.constant 0 : index
      %c0_22 = arith.constant 0 : index
      %37 = vector.load %arg6[%c0_21, %c0_22] : memref<8x1xf32, #tpu.memory_space<vmem>>, vector<8x1xf32>
      %c0_23 = arith.constant 0 : index
      %c0_24 = arith.constant 0 : index
      %38 = vector.load %arg5[%c0_23, %c0_24] : memref<8x1xf32, #tpu.memory_space<vmem>>, vector<8x1xf32>
      %39 = math.log %37 : vector<8x1xf32>
      %40 = arith.addf %38, %39 : vector<8x1xf32>
      %c0_25 = arith.constant 0 : index
      %c0_26 = arith.constant 0 : index
      %41 = vector.load %arg7[%c0_25, %c0_26] : memref<8x1xf32, #tpu.memory_space<vmem>>, vector<8x1xf32>
      %42 = arith.subf %40, %41 : vector<8x1xf32>
      %43 = tpu.transpose %37, [1, 0] : vector<8x1xf32> -> vector<1x8xf32>
      %44 = vector.broadcast %43 : vector<1x8xf32> to vector<8x8xf32>
      %45 = vector.broadcast %37 : vector<8x1xf32> to vector<8x8xf32>
      %46 = arith.cmpf olt, %44, %45 : vector<8x8xf32>
      %47 = arith.extui %46 : vector<8x8xi1> to vector<8x8xi32>
      %48 = arith.sitofp %47 : vector<8x8xi32> to vector<8x8xf32>
      %cst_27 = arith.constant 1.000000e+00 : f32
      %49 = vector.broadcast %cst_27 : f32 to vector<8x1xf32>
      %cst_28 = arith.constant dense<0.000000e+00> : vector<8x1xf32>
      %50 = tpu.matmul %48, %49, %cst_28 {dimension_numbers = #tpu.dot_dimension_numbers<[1], [0], [0], [1], [0, 0, 1, 1], [], []>} : vector<8x8xf32>, vector<8x1xf32>, vector<8x1xf32> -> vector<8x1xf32>
      %51 = tpu.iota {dimensions = array<i32: 1>} : vector<1x8xi32>
      %52 = arith.sitofp %51 : vector<1x8xi32> to vector<1x8xf32>
      %53 = vector.broadcast %52 : vector<1x8xf32> to vector<8x8xf32>
      %54 = vector.broadcast %50 : vector<8x1xf32> to vector<8x8xf32>
      %55 = arith.cmpf ogt, %53, %54 : vector<8x8xf32>
      %56 = arith.extui %55 : vector<8x8xi1> to vector<8x8xi32>
      %57 = arith.sitofp %56 : vector<8x8xi32> to vector<8x8xf32>
      %c0_29 = arith.constant 0 : index
      %c0_30 = arith.constant 0 : index
      %58 = vector.load %arg3[%c0_29, %c0_30] : memref<8x1xf32, #tpu.memory_space<vmem>>, vector<8x1xf32>
      %cst_31 = arith.constant dense<0.000000e+00> : vector<8x1xf32>
      %59 = tpu.matmul %57, %58, %cst_31 {dimension_numbers = #tpu.dot_dimension_numbers<[1], [0], [0], [1], [0, 0, 1, 1], [], []>} : vector<8x8xf32>, vector<8x1xf32>, vector<8x1xf32> -> vector<8x1xf32>
      %60 = arith.mulf %42, %59 : vector<8x1xf32>
      %61 = vector.shape_cast %60 : vector<8x1xf32> to vector<1x8x1xf32>
      %cst_32 = arith.constant dense<0.000000e+00> : vector<1xf32>
      %62 = vector.multi_reduction <add>, %61, %cst_32 [1, 2] : vector<1x8x1xf32> to vector<1xf32>
      %63 = vector.shape_cast %62 : vector<1xf32> to vector<1x1x1xf32>
      %64 = vector.extract %63[0, 0, 0] : f32 from vector<1x1x1xf32>
      %65 = vector.broadcast %64 : f32 to vector<1x1xf32>
      %cst_33 = arith.constant 1.250000e-01 : f32
      %66 = vector.broadcast %cst_33 : f32 to vector<1x1xf32>
      %67 = arith.mulf %65, %66 : vector<1x1xf32>
      %c0_34 = arith.constant 0 : index
      %c0_35 = arith.constant 0 : index
      %68 = vector.load %arg4[%c0_34, %c0_35] : memref<1x1xf32, #tpu.memory_space<vmem>>, vector<1x1xf32>
      tpu.vector_store %arg4[%c0_34, %c0_35], %67 {strides = array<i32>} : memref<1x1xf32, #tpu.memory_space<vmem>>, vector<1x1xf32>,
    } else {
    }
    return
  }
  func.func @transform_0(%arg0: i32) -> (i32, i32) {
    %c0_i32 = arith.constant 0 : i32
    %c0_i32_0 = arith.constant 0 : i32
    return %c0_i32, %arg0 : i32, i32
  }
  func.func @transform_1(%arg0: i32) -> (i32, i32) {
    %c0_i32 = arith.constant 0 : i32
    %c0_i32_0 = arith.constant 0 : i32
    %c0_i32_1 = arith.constant 0 : i32
    return %c0_i32, %c0_i32_0 : i32, i32
  }
  func.func @transform_2(%arg0: i32) -> (i32, i32) {
    %c0_i32 = arith.constant 0 : i32
    %c0_i32_0 = arith.constant 0 : i32
    %c0_i32_1 = arith.constant 0 : i32
    return %c0_i32, %c0_i32_0 : i32, i32
  }
  func.func @transform_3(%arg0: i32) -> (i32, i32) {
    %c0_i32 = arith.constant 0 : i32
    %c0_i32_0 = arith.constant 0 : i32
    %c0_i32_1 = arith.constant 0 : i32
    return %c0_i32, %c0_i32_0 : i32, i32
  }
}

</mosaic_0001>

<llo_original>
// kernel: tpu_custom_call.1
$region0: #{tpu_custom_call.1}
  #allocation0 [shape = 'u32[]', space=smem, size = 0x4, offset = 0x4, fixed_abs, tag = 'smem constant byte address 0x4 - core index']
  #allocation1 [shape = 'u32[72,128]{1,0:T(1,128)}', space=vmem, size = 0x9000, scoped, tag = 'internal scratch']
  #allocation2 [shape = 'f32[8,1]{1,0:T(8,128)}', space=vmem, size = 0x1000, scoped, tag = 'scratch operand']
  #allocation3 [shape = 'f32[8,1]{1,0:T(8,128)}', space=vmem, size = 0x1000, scoped, tag = 'scratch operand']
  #allocation4 [shape = 'f32[8,1]{1,0:T(8,128)}', space=vmem, size = 0x1000, scoped, tag = 'scratch operand']
  %s0 = inlined_call_operand.vmem [shape: f32[8,32], index: 0, kind: input, shape index: {}]
  %s1 = inlined_call_operand.vmem [shape: s32[8,1], index: 1, kind: input, shape index: {}]
  %s2 = inlined_call_operand.vmem [shape: f32[8,1], index: 2, kind: input, shape index: {}]
  %s3 = inlined_call_operand.hbm [shape: f32[1,1], index: 3, kind: output, shape index: {}]
  %s4 = sld [smem:[#allocation0]]
  $region30: #{tpu_custom_call.1} parent=0
    _
  %s6 = ssub.s32 1, %s4
  %s7 = scalar_select 0, %s6, %s4
  $region1: #{tpu_custom_call.1} parent=0
    #allocation5 [shape = 'u8[512]{0}', space=vmem, size = 0x400, scoped, tag = 'output window, operand 0, single buffered']
    #allocation6 [shape = 's32[1]{0}', space=sflag, size = 0x4, scoped, tag = 'scoped memory for tpu_custom_call.1']
    %8 = vsyncpa [#allocation6], 0
    // Predicated region
    $region2: #{tpu_custom_call.1} parent=1 // pred_check
      _
    $region3: #{tpu_custom_call.1} parent=1 // pred_check_branch
      %10 = sbr.rel (0) target = $region5
    $region4: #{tpu_custom_call.1} parent=1 // pred_region
      _
    $region5: #{tpu_custom_call.1} parent=1 // pred_fallthru
      _
    // Predicated region
    $region6: #{tpu_custom_call.1} parent=1 // pred_check
      _
    $region7: #{tpu_custom_call.1} parent=1 // pred_check_branch
      %12 = sbr.rel (0) target = $region9
    $region8: #{tpu_custom_call.1} parent=1 // pred_region
      _
    $region9: #{tpu_custom_call.1} parent=1 // pred_fallthru
      _
    // Predicated region
    $region10: #{tpu_custom_call.1} parent=1 // pred_check
      _
    $region11: #{tpu_custom_call.1} parent=1 // pred_check_branch
      %14 = sbr.rel (0) target = $region13
    $region12: #{tpu_custom_call.1} parent=1 // pred_region
      _
    $region13: #{tpu_custom_call.1} parent=1 // pred_fallthru
      _
    %p15 = scmp.eq.s32.totalorder 0, 0
    // Predicated region
    $region14: #{tpu_custom_call.1} parent=1 // pred_check
      %p16 = pneg %p15
    $region15: #{tpu_custom_call.1} parent=1 // pred_check_branch
      %18 = sbr.rel (%p16) target = $region17
    $region16: #{tpu_custom_call.1} parent=1 // pred_region
      %vm19 = vcmask 7168
      %20 = vst.msk [vmem:[#allocation2] sm:$0xff] %vm19, -inf
      %21 = vst.msk [vmem:[#allocation3] sm:$0xff] %vm19, 0.0
      %22 = vst.msk [vmem:[#allocation4] sm:$0xff] %vm19, 0.0
    $region17: #{tpu_custom_call.1} parent=1 // pred_fallthru
      _
    %v23 = vld [vmem:[%s0] sm:$0xff]
    %v24 = vld [vmem:[%s1] sm:$0xff]
    %vm25 = vcmask 261120
    %v26 = vsel %vm25, %v23, -inf
    %27 = vmax.xlane.f32.xlu0 %v26
    %v28 = vpop.xlane.xlu0 %27
    %v29 = vld [vmem:[#allocation2] sm:$0xff]
    %v30 = vmax.f32 %v29, %v28
    %v31 = vld [vmem:[#allocation3] sm:$0xff]
    %v32 = vsub.f32 %v29, %v30
    %v33 = vmul.f32 %v32, 1.442695
    %v34 = vpow.pop %v33
    %v35 = vmul.f32 %v31, %v34
    %37 = vset.pattern.permute.xlu0 0
    %38 = vperm.xlu0 %37, %v30
    %v39 = vpop.permute.xlu0 %38
    %v41 = vsub.f32 %v23, %v39
    %v42 = vmul.f32 %v41, 1.442695
    %v43 = vpow.pop %v42
    %v44 = vsel %vm25, %v43, 0.0
    %45 = vadd.xlane.f32.xlu0 %v44
    %v46 = vpop.xlane.xlu0 %45
    %v47 = vadd.f32 %v35, %v46
    %vm48 = vcmask 7168
    %49 = vst.msk [vmem:[#allocation3] sm:$0xff] %vm48, %v47
    %50 = vst.msk [vmem:[#allocation2] sm:$0xff] %vm48, %v30
    %v51 = vlaneseq
    %v52 = vand.u32 %v51, 127
    %s53 = smul.u32 0, 32
    %v54 = vstv %s53
    %v55 = vadd.s32 %v52, %v54
    %v56 = vld [vmem:[#allocation4] sm:$0xff]
    %57 = vset.pattern.permute.xlu0 0
    %58 = vperm.xlu0 %57, %v24
    %v59 = vpop.permute.xlu0 %58
    %vm60 = vcmp.eq.s32.totalorder %v55, %v59
    %v61 = vsel %vm60, %v23, 0.0
    %v62 = vsel %vm25, %v61, 0.0
    %63 = vadd.xlane.f32.xlu0 %v62
    %v64 = vpop.xlane.xlu0 %63
    %v65 = vadd.f32 %v56, %v64
    %66 = vst.msk [vmem:[#allocation4] sm:$0xff] %vm48, %v65
    // Predicated region
    $region18: #{tpu_custom_call.1} parent=1 // pred_check
      %p67 = pneg %p15
    $region19: #{tpu_custom_call.1} parent=1 // pred_check_branch
      %69 = sbr.rel (%p67) target = $region21
    $region20: #{tpu_custom_call.1} parent=1 // pred_region
      %v70 = vld [vmem:[#allocation3] sm:$0xff]
      %v71 = vld [vmem:[#allocation2] sm:$0xff]
      %v72 = vlog2.pop %v70
      %v73 = vmul.f32 %v72, 0.6931472
      %v74 = vadd.f32 %v71, %v73
      %v75 = vld [vmem:[#allocation4] sm:$0xff]
      %v76 = vsub.f32 %v74, %v75
      %77 = vxpose.xlu0.b32.start [1/16] %v70, 128
      %78 = vxpose.xlu0.b32.cont [2/16] 0.0, 128
      %79 = vxpose.xlu0.b32.cont [3/16] 0.0, 128
      %80 = vxpose.xlu0.b32.cont [4/16] 0.0, 128
      %81 = vxpose.xlu0.b32.cont [5/16] 0.0, 128
      %82 = vxpose.xlu0.b32.cont [6/16] 0.0, 128
      %83 = vxpose.xlu0.b32.cont [7/16] 0.0, 128
      %84 = vxpose.xlu0.b32.cont [8/16] 0.0, 128
      %85 = vxpose.xlu0.b32.cont [9/16] 0.0, 128
      %86 = vxpose.xlu0.b32.cont [10/16] 0.0, 128
      %87 = vxpose.xlu0.b32.cont [11/16] 0.0, 128
      %88 = vxpose.xlu0.b32.cont [12/16] 0.0, 128
      %89 = vxpose.xlu0.b32.cont [13/16] 0.0, 128
      %90 = vxpose.xlu0.b32.cont [14/16] 0.0, 128
      %91 = vxpose.xlu0.b32.cont [15/16] 0.0, 128
      %92 = vxpose.xlu0.b32.end [16/16] 0.0, 128
      %v93 = vpop.trf.xlu0
      %v94 = vpop.trf.xlu0
      %v95 = vpop.trf.xlu0
      %v96 = vpop.trf.xlu0
      %v97 = vpop.trf.xlu0
      %v98 = vpop.trf.xlu0
      %v99 = vpop.trf.xlu0
      %v100 = vpop.trf.xlu0
      %v101 = vpop.trf.xlu0
      %v102 = vpop.trf.xlu0
      %v103 = vpop.trf.xlu0
      %v104 = vpop.trf.xlu0
      %v105 = vpop.trf.xlu0
      %v106 = vpop.trf.xlu0
      %v107 = vpop.trf.xlu0
      %v108 = vpop.trf.xlu0
      %v109 = vperm.slane %v93, 0
      %111 = vset.pattern.permute.xlu0 0
      %112 = vperm.xlu0 %111, %v70
      %v113 = vpop.permute.xlu0 %112
      %vm115 = vcmp.lt.f32.partialorder %v109, %v113
      %v116 = vsel %vm115, 1, 0
      %v117 = vcvt.s32.f32 %v116
      %vm118 = vcmask 64512
      %v120 = vsel %vm118, %v117, 0
      %122 = vmatpush.msra.mxu0 0.0
      %123 = vmatpush.msra.mxu0 0.0
      %124 = vmatpush.msra.mxu0 0.0
      %125 = vmatpush.msra.mxu0 0.0
      %126 = vmatpush.msra.mxu0 0.0
      %127 = vmatpush.msra.mxu0 0.0
      %128 = vmatpush.msra.mxu0 0.0
      %129 = vmatpush.msra.mxu0 0.0
      %130 = vmatpush.msra.mxu0 0.0
      %131 = vmatpush.msra.mxu0 0.0
      %132 = vmatpush.msra.mxu0 0.0
      %133 = vmatpush.msra.mxu0 0.0
      %134 = vmatpush.msra.mxu0 0.0
      %135 = vmatpush.msra.mxu0 0.0
      %136 = vmatpush.msra.mxu0 0.0
      %137 = vmatpush.msra.mxu0 1.0
      %138 = vmatmul.f32.gmra.mxu0 %v120
      %v139 = vpop.f32.mrf.mxu0
      %v140 = vadd.f32 0.0, %v139
      %141 = vdwg.mxu0
      %v142 = vcvt.s32.f32 %v52
      %144 = vset.pattern.permute.xlu0 0
      %145 = vperm.xlu0 %144, %v140
      %v146 = vpop.permute.xlu0 %145
      %vm148 = vcmp.gt.f32.partialorder %v142, %v146
      %v149 = vsel %vm148, 1, 0
      %v150 = vcvt.s32.f32 %v149
      %v151 = vld [vmem:[%s2] sm:$0xff]
      %v153 = vsel %vm118, %v150, 0
      %155 = vmatpush.msra.mxu0 0.0
      %156 = vmatpush.msra.mxu0 0.0
      %157 = vmatpush.msra.mxu0 0.0
      %158 = vmatpush.msra.mxu0 0.0
      %159 = vmatpush.msra.mxu0 0.0
      %160 = vmatpush.msra.mxu0 0.0
      %161 = vmatpush.msra.mxu0 0.0
      %162 = vmatpush.msra.mxu0 0.0
      %163 = vmatpush.msra.mxu0 0.0
      %164 = vmatpush.msra.mxu0 0.0
      %165 = vmatpush.msra.mxu0 0.0
      %166 = vmatpush.msra.mxu0 0.0
      %167 = vmatpush.msra.mxu0 0.0
      %168 = vmatpush.msra.mxu0 0.0
      %169 = vmatpush.msra.mxu0 0.0
      %170 = vmatpush.msra.mxu0 %v151
      %171 = vmatmul.f32.gmra.mxu0 %v153
      %v172 = vpop.f32.mrf.mxu0
      %v173 = vadd.f32 0.0, %v172
      %174 = vdwg.mxu0
      %v175 = vmul.f32 %v76, %v173
      %v176 = vsel %vm48, %v175, 0.0
      %177 = vadd.xlane.f32.xlu0 %v176
      %v178 = vpop.xlane.xlu0 %177
      %v179 = vrot.slane %v178, 4
      %v180 = vadd.f32 %v178, %v179
      %v181 = vrot.slane %v180, 2
      %v182 = vadd.f32 %v180, %v181
      %v183 = vrot.slane %v182, 1
      %v184 = vadd.f32 %v182, %v183
      %s185 = vtos %v184
      %v186 = vstv %s185
      %v187 = vmul.f32 %v186, 0.125
      %vm188 = vcmask 0
      %189 = vst.msk [vmem:[#allocation5] sm:$0x1] %vm188, %v187
    $region21: #{tpu_custom_call.1} parent=1 // pred_fallthru
      _
    // Predicated region
    $region22: #{tpu_custom_call.1} parent=1 // pred_check
      _
    $region23: #{tpu_custom_call.1} parent=1 // pred_check_branch
      %191 = sbr.rel (0) target = $region25
    $region24: #{tpu_custom_call.1} parent=1 // pred_region
      %193 = vsyncadd [#allocation6], 0
      %s195 = sshll.u32 [#allocation5], 4
      %s196 = int_to_ptr.vmem [resolvable:$true] %s195
      %s197 = sshll.u32 %s3, 4
      %s198 = int_to_ptr.hbm [resolvable:$true] %s197
      %200 = dma.vmem_to_hbm [thread:$0]  %s196, 16, %s198, [#allocation6]
    $region25: #{tpu_custom_call.1} parent=1 // pred_fallthru
      _
    // Predicated region
    $region26: #{tpu_custom_call.1} parent=1 // pred_check
      _
    $region27: #{tpu_custom_call.1} parent=1 // pred_check_branch
      %202 = sbr.rel (0) target = $region29
    $region28: #{tpu_custom_call.1} parent=1 // pred_region
      %204 = dma.done [#allocation6], 16
    $region29: #{tpu_custom_call.1} parent=1 // pred_fallthru
      _
    %205 = vsyncpa [#allocation6], 1

</llo_original>
